<compile_context>
chip_gen: v7x
topology: tpu7x:2x2x1
jax: 0.10.0
libtpu: 0.0.40
codegen_flags: <defaults>
</compile_context>

<pallas_src>
import math
from functools import partial

import jax
import jax.numpy as jnp
from jax import lax
from jax.experimental import pallas as pl
from jax.experimental.pallas import tpu as pltpu


_INV_SQRT2 = 1.0 / math.sqrt(2.0)


def _gelu_exact(x):
    # PyTorch nn.GELU() default = exact (erf-based) GELU; keep the math in f32.
    return 0.5 * x * (1.0 + lax.erf(x * _INV_SQRT2))


# ----------------------------------------------------------------------------- kernel


def _mlpc_kernel(x_ref, w1_ref, b1_ref, w2_ref, b2_ref, w3_ref, b3_ref, o_ref):
    # Per grid step (TM = MLPs handled this step, TB = batch rows this step):
    #   x_ref : (TB, Din)         shared across all M-steps
    #   w1_ref: (Din, TM*H)       layer-1 weights of the TM MLPs, lane-concatenated
    #   b1_ref: (TM, 1, H)        f32
    #   w2_ref: (TM, H, H)
    #   b2_ref: (TM, 1, H)        f32
    #   w3_ref: (TM, H, Dout)
    #   b3_ref: (TM, 1, Dout)     f32
    #   o_ref : (TB, TM*Dout)     lane-dense output slab (one dense store per step)
    tm, _, h = w2_ref.shape
    dout = w3_ref.shape[-1]

    x = x_ref[...].astype(w1_ref.dtype)

    # Layer 1 for all TM MLPs in ONE lane-dense MXU pass, accumulated in f32.
    h1 = jnp.dot(x, w1_ref[...], preferred_element_type=jnp.float32)  # (TB, TM*H) f32

    # Layers 2/3 are per-MLP (block-diagonal); TM is small and static so the Python
    # loop fully unrolls with static slices.  Per-t slices at non-128 lane offsets
    # cost XLU relayout, but that is hidden filler while the kernel is weight-DMA
    # bound.
    # TODO(synk): for very large TM (> ~32), switch to a lax.fori_loop over t with a
    # VMEM output scratch to bound live ranges / compile time.
    outs = []
    for t in range(tm):
        a1 = _gelu_exact(h1[:, t * h:(t + 1) * h] + b1_ref[t])             # (TB, H) f32
        a2 = jnp.dot(a1.astype(w2_ref.dtype), w2_ref[t],
                     preferred_element_type=jnp.float32) + b2_ref[t]
        a2 = _gelu_exact(a2)                                               # (TB, H) f32
        a3 = jnp.dot(a2.astype(w3_ref.dtype), w3_ref[t],
                     preferred_element_type=jnp.float32) + b3_ref[t]       # (TB, Dout)
        outs.append(a3)

    res = outs[0] if tm == 1 else jnp.concatenate(outs, axis=-1)           # (TB, TM*Dout)
    o_ref[...] = res.astype(o_ref.dtype)   # single lane-dense store per grid step


# --------------------------------------------------------------------- sizing helpers


def _tpu_vmem_bytes():
    try:
        return int(pltpu.get_tpu_info().vmem_capacity_bytes)
    except Exception:
        return 64 * 1024 * 1024   # conservative fallback (v7x-sized VMEM)


def _buffered_kwarg_supported():
    try:
        pl.BlockSpec((8, 128), lambda i: (0, 0), pipeline_mode=pl.Buffered(3))
        return True
    except Exception:
        return False


_BUFFERED_OK = _buffered_kwarg_supported()


def _block_vmem_bytes(tm, tb, Din, H, Dout, wsize, xsize, nbuf):
    """Rough per-step VMEM footprint estimate (weights x nbuf, I/O x2, f32 acts)."""
    wblk = tm * (Din * H + H * H + H * Dout) * wsize
    bblk = tm * (2 * H + Dout) * 4
    xblk = tb * Din * xsize
    oblk = tb * tm * Dout * xsize
    acts = 4 * tb * (tm * H + 4 * H + 3 * tm * Dout)
    return nbuf * (wblk + bblk) + 2 * (xblk + oblk) + acts


def _choose_tb(B, max_tb=256):
    """Batch rows per step.  Full B when small; otherwise a multiple-of-8 divisor."""
    if B <= max_tb:
        return B
    for tb in range(max_tb, 0, -8):
        if B % tb == 0:
            return tb
    return B


def _choose_tm(M, tb, Din, H, Dout, wsize, xsize, budget, max_unroll=32):
    """MLPs fused per grid step.

    Multi-step M grids need block lane widths TM*H / TM*Dout to be multiples of 128
    and TM | M; a single-step grid (blocks == full arrays) has no alignment
    constraint.  Pick the largest TM whose (double-buffered) block set fits the VMEM
    budget, preferring >= 4 grid steps (>= 2 per v7x TensorCore).
    """
    lane_mult = lambda d: 128 // math.gcd(d, 128)
    a, b = lane_mult(H), lane_mult(Dout)
    tm0 = a * b // math.gcd(a, b)
    if tm0 >= M:
        # TODO(synk): for very large, lane-misaligned M this single-step fallback can
        # exceed VMEM; a K/M-tiled per-MLP variant would be needed for that corner.
        return M
    hi = min(M, max(max_unroll, tm0))
    cands = [t for t in range(tm0, hi + 1, tm0) if M % t == 0]
    if not cands:
        return M
    good = [t for t in cands
            if _block_vmem_bytes(t, tb, Din, H, Dout, wsize, xsize, 2) <= budget]
    if not good:
        good = [cands[0]]
    for min_steps in (4, 2, 1):
        tier = [t for t in good if M // t >= min_steps]
        if tier:
            return max(tier)
    return max(good)


# --------------------------------------------------------------------------- wrappers


def prepare_mlpc_params(w1, b1, w2, b2, w3, b3, weights_dtype=None):
    """One-time weight re-layout.  Call ONCE at model init, keep the result.

    w1: (M, Din, H) -> (Din, M*H) lane-concatenated slab (column = mlp*H + h).
    Optionally casts weight matrices to `weights_dtype` (e.g. jnp.bfloat16) so the
    kernel streams half the HBM bytes; biases stay f32 (f32 accumulation in-kernel).
    """
    M, Din, H = w1.shape
    Dout = w3.shape[-1]
    wdt = jnp.dtype(weights_dtype) if weights_dtype is not None else w1.dtype
    return dict(
        w1cat=jnp.transpose(w1, (1, 0, 2)).reshape(Din, M * H).astype(wdt),
        b1=b1.reshape(M, 1, H).astype(jnp.float32),
        w2=w2.astype(wdt),
        b2=b2.reshape(M, 1, H).astype(jnp.float32),
        w3=w3.astype(wdt),
        b3=b3.reshape(M, 1, Dout).astype(jnp.float32),
    )


@partial(jax.jit, static_argnames=("tm", "tb"))
def mlpc_forward(x, params, tm=None, tb=None):
    """x: (B, Din), params from prepare_mlpc_params.  Returns (B, M, Dout)."""
    w1cat, b1 = params["w1cat"], params["b1"]
    w2, b2 = params["w2"], params["b2"]
    w3, b3 = params["w3"], params["b3"]

    B, Din = x.shape
    M, H, _ = w2.shape
    Dout = w3.shape[-1]
    wsize = jnp.dtype(w2.dtype).itemsize
    xsize = jnp.dtype(x.dtype).itemsize

    # Generation-aware VMEM budgets (128 MiB on v5e/v6e, 64 MiB on v7x).
    cap = _tpu_vmem_bytes()
    vmem_limit = min(cap - 16 * 1024 * 1024, int(cap * 0.80))
    budget = vmem_limit - 8 * 1024 * 1024

    if tb is None:
        tb = _choose_tb(B)
    if tm is None:
        tm = _choose_tm(M, tb, Din, H, Dout, wsize, xsize, budget)

    # Validate (user-supplied tm/tb must satisfy the (8,128) block rules).
    if M % tm != 0:
        raise ValueError(f"tm={tm} must divide num_mlps={M}")
    mb = M // tm
    if mb > 1 and ((tm * H) % 128 != 0 or (tm * Dout) % 128 != 0):
        raise ValueError(f"multi-step M grid needs tm*H and tm*Dout to be multiples "
                         f"of 128 (tm={tm}, H={H}, Dout={Dout}); pass tm=None")
    if B % tb != 0:
        raise ValueError(f"tb={tb} must divide batch={B}")
    nb = B // tb
    if nb > 1 and tb % 8 != 0:
        raise ValueError(f"multi-step B grid needs tb % 8 == 0 (tb={tb})")

    # Deeper weight buffering when it fits (weight-DMA bound at small B).
    use_buf3 = (_BUFFERED_OK and mb >= 3 and
                _block_vmem_bytes(tm, tb, Din, H, Dout, wsize, xsize, 3) <= budget)
    est = _block_vmem_bytes(tm, tb, Din, H, Dout, wsize, xsize, 3 if use_buf3 else 2)
    if est + 8 * 1024 * 1024 > vmem_limit:
        vmem_limit = min(cap - 4 * 1024 * 1024, est + 8 * 1024 * 1024)

    w_pm = dict(pipeline_mode=pl.Buffered(3)) if use_buf3 else {}

    # Grid: M-blocks outer (weights change), B-tiles inner (weight block index is
    # constant along the inner axis -> no weight re-DMA per B-tile).
    in_specs = [
        pl.BlockSpec((tb, Din), lambda mi, bi: (bi, 0)),                 # x
        pl.BlockSpec((Din, tm * H), lambda mi, bi: (0, mi), **w_pm),     # layer-1 slab
        pl.BlockSpec((tm, 1, H), lambda mi, bi: (mi, 0, 0)),             # b1
        pl.BlockSpec((tm, H, H), lambda mi, bi: (mi, 0, 0), **w_pm),     # w2
        pl.BlockSpec((tm, 1, H), lambda mi, bi: (mi, 0, 0)),             # b2
        pl.BlockSpec((tm, H, Dout), lambda mi, bi: (mi, 0, 0), **w_pm),  # w3
        pl.BlockSpec((tm, 1, Dout), lambda mi, bi: (mi, 0, 0)),          # b3
    ]
    out_spec = pl.BlockSpec((tb, tm * Dout), lambda mi, bi: (bi, mi))

    flops = 2 * B * M * (Din * H + H * H + H * Dout)
    bytes_accessed = (mb * B * Din * xsize
                      + M * (Din * H + H * H + H * Dout) * wsize
                      + M * (2 * H + Dout) * 4
                      + B * M * Dout * xsize)

    out2d = pl.pallas_call(
        _mlpc_kernel,
        out_shape=jax.ShapeDtypeStruct((B, M * Dout), x.dtype),
        grid_spec=pltpu.PrefetchScalarGridSpec(
            num_scalar_prefetch=0,
            grid=(mb, nb),
            in_specs=in_specs,
            out_specs=out_spec,
        ),
        compiler_params=pltpu.CompilerParams(
            dimension_semantics=("parallel", "parallel"),
            vmem_limit_bytes=int(vmem_limit),
        ),
        cost_estimate=pl.CostEstimate(
            flops=flops,
            transcendentals=2 * B * M * H,      # two GELUs per MLP
            bytes_accessed=bytes_accessed,
        ),
    )(x, w1cat, b1, w2, b2, w3, b3)

    # (B, M*Dout) -> (B, M, Dout): contiguous row-major reshape, no data movement.
    return out2d.reshape(B, M, Dout)


# -------------------------------------------------------------------------- reference


def _reference(x, w1, b1, w2, b2, w3, b3):
    # Pure-JAX reference matching the PyTorch module (exact GELU), f32 throughout.
    def one(wa, ba, wb, bb, wc, bc):
        h = _gelu_exact(x @ wa + ba)
        h = _gelu_exact(h @ wb + bb)
        return h @ wc + bc
    M = w1.shape[0]
    return jnp.stack(
        [one(w1[m], b1[m], w2[m], b2[m], w3[m], b3[m]) for m in range(M)], axis=1)


if __name__ == "__main__":
    # config.yaml is not available; use small, config-consistent synthetic sizes.
    key = jax.random.PRNGKey(0)

    def make_case(k, B, Din, H, Dout, M, dtype=jnp.float32, scale=0.05):
        ks = jax.random.split(k, 7)
        x = jax.random.normal(ks[0], (B, Din), dtype=dtype)
        w1 = scale * jax.random.normal(ks[1], (M, Din, H), dtype=dtype)
        b1 = scale * jax.random.normal(ks[2], (M, H), dtype=dtype)
        w2 = scale * jax.random.normal(ks[3], (M, H, H), dtype=dtype)
        b2 = scale * jax.random.normal(ks[4], (M, H), dtype=dtype)
        w3 = scale * jax.random.normal(ks[5], (M, H, Dout), dtype=dtype)
        b3 = scale * jax.random.normal(ks[6], (M, Dout), dtype=dtype)
        return x, w1, b1, w2, b2, w3, b3

    keys = jax.random.split(key, 4)

    # Case 1: tiny, lane-misaligned dims -> single M-step grid (blocks == full arrays).
    x, *wb = make_case(keys[0], B=8, Din=16, H=32, Dout=8, M=3)
    p = prepare_mlpc_params(*wb)                       # one-time layout prep
    out = jax.block_until_ready(mlpc_forward(x, p))
    ref = _reference(x, *wb)
    assert out.shape == (8, 3, 8), out.shape
    assert jnp.allclose(out, ref, atol=1e-4, rtol=1e-4), float(jnp.abs(out - ref).max())

    # Case 2: lane-aligned dims -> 4-step M grid (>=2 steps per v7x TC), TM=2 fused,
    # triple-buffered weight DMAs when supported.
    x, *wb = make_case(keys[1], B=8, Din=64, H=128, Dout=128, M=8)
    p = prepare_mlpc_params(*wb)
    out = jax.block_until_ready(mlpc_forward(x, p))
    ref = _reference(x, *wb)
    assert out.shape == (8, 8, 128), out.shape
    assert jnp.allclose(out, ref, atol=2e-4, rtol=2e-4), float(jnp.abs(out - ref).max())

    # Case 3: bf16 weight streaming (half the HBM weight bytes; f32 accumulation).
    x, *wb = make_case(keys[2], B=8, Din=64, H=128, Dout=128, M=4)
    p = prepare_mlpc_params(*wb, weights_dtype=jnp.bfloat16)
    out = jax.block_until_ready(mlpc_forward(x, p))
    ref = _reference(x, *wb)
    assert out.shape == (8, 4, 128), out.shape
    assert jnp.allclose(out, ref, atol=3e-2, rtol=3e-2), float(jnp.abs(out - ref).max())

    # Case 4: larger batch -> B-tiling grid axis (2 B-tiles x 4 M-steps).
    x, *wb = make_case(keys[3], B=512, Din=64, H=128, Dout=128, M=4)
    p = prepare_mlpc_params(*wb)
    out = jax.block_until_ready(mlpc_forward(x, p))
    ref = _reference(x, *wb)
    assert out.shape == (512, 4, 128), out.shape
    assert jnp.allclose(out, ref, atol=2e-4, rtol=2e-4), float(jnp.abs(out - ref).max())

    print("KERNEL_OK")
</pallas_src>

<mosaic_0001>
module attributes {stable_mosaic.version = 11 : i64} {
  func.func @_mlpc_kernel(%arg0: i32, %arg1: i32, %arg2: memref<8x16xf32, #tpu.memory_space<vmem>>, %arg3: memref<16x96xf32, #tpu.memory_space<vmem>>, %arg4: memref<3x1x32xf32, #tpu.memory_space<vmem>>, %arg5: memref<3x32x32xf32, #tpu.memory_space<vmem>>, %arg6: memref<3x1x32xf32, #tpu.memory_space<vmem>>, %arg7: memref<3x32x8xf32, #tpu.memory_space<vmem>>, %arg8: memref<3x1x8xf32, #tpu.memory_space<vmem>>, %arg9: memref<8x24xf32, #tpu.memory_space<vmem>>) attributes {dimension_semantics = [#tpu.dimension_semantics<parallel>, #tpu.dimension_semantics<parallel>], iteration_bounds = array<i64: 1, 1>, scalar_prefetch = 0 : i64, scratch_operands = 0 : i64, tpu.core_type = #tpu.core_type<tc>, window_params = [{transform_indices = @transform_0, window_bounds = array<i64: 8, 16>}, {transform_indices = @transform_1, window_bounds = array<i64: 16, 96>}, {transform_indices = @transform_2, window_bounds = array<i64: 3, 1, 32>}, {transform_indices = @transform_3, window_bounds = array<i64: 3, 32, 32>}, {transform_indices = @transform_4, window_bounds = array<i64: 3, 1, 32>}, {transform_indices = @transform_5, window_bounds = array<i64: 3, 32, 8>}, {transform_indices = @transform_6, window_bounds = array<i64: 3, 1, 8>}, {transform_indices = @transform_7, window_bounds = array<i64: 8, 24>}]} {
    %c0 = arith.constant 0 : index
    %c0_0 = arith.constant 0 : index
    %0 = vector.load %arg2[%c0, %c0_0] : memref<8x16xf32, #tpu.memory_space<vmem>>, vector<8x16xf32>
    %c0_1 = arith.constant 0 : index
    %c0_2 = arith.constant 0 : index
    %1 = vector.load %arg3[%c0_1, %c0_2] : memref<16x96xf32, #tpu.memory_space<vmem>>, vector<16x96xf32>
    %cst = arith.constant dense<0.000000e+00> : vector<8x96xf32>
    %2 = tpu.matmul %0, %1, %cst {dimension_numbers = #tpu.dot_dimension_numbers<[1], [0], [0], [1], [0, 0, 1, 1], [], []>} : vector<8x16xf32>, vector<16x96xf32>, vector<8x96xf32> -> vector<8x96xf32>
    %3 = vector.extract_strided_slice %2 {offsets = [0, 0], sizes = [8, 32], strides = [1, 1]} : vector<8x96xf32> to vector<8x32xf32>
    %c0_3 = arith.constant 0 : index
    %c0_4 = arith.constant 0 : index
    %c0_5 = arith.constant 0 : index
    %4 = vector.load %arg4[%c0_3, %c0_4, %c0_5] : memref<3x1x32xf32, #tpu.memory_space<vmem>>, vector<1x1x32xf32>
    %5 = vector.shape_cast %4 : vector<1x1x32xf32> to vector<1x32xf32>
    %6 = vector.broadcast %5 : vector<1x32xf32> to vector<8x32xf32>
    %7 = arith.addf %3, %6 : vector<8x32xf32>
    %cst_6 = arith.constant 5.000000e-01 : f32
    %8 = vector.broadcast %cst_6 : f32 to vector<8x32xf32>
    %9 = arith.mulf %8, %7 : vector<8x32xf32>
    %cst_7 = arith.constant 0.707106769 : f32
    %10 = vector.broadcast %cst_7 : f32 to vector<8x32xf32>
    %11 = arith.mulf %7, %10 : vector<8x32xf32>
    %12 = math.erf %11 : vector<8x32xf32>
    %cst_8 = arith.constant 1.000000e+00 : f32
    %13 = vector.broadcast %cst_8 : f32 to vector<8x32xf32>
    %14 = arith.addf %13, %12 : vector<8x32xf32>
    %15 = arith.mulf %9, %14 : vector<8x32xf32>
    %c0_9 = arith.constant 0 : index
    %c0_10 = arith.constant 0 : index
    %c0_11 = arith.constant 0 : index
    %16 = vector.load %arg5[%c0_9, %c0_10, %c0_11] : memref<3x32x32xf32, #tpu.memory_space<vmem>>, vector<1x32x32xf32>
    %17 = vector.shape_cast %16 : vector<1x32x32xf32> to vector<32x32xf32>
    %cst_12 = arith.constant dense<0.000000e+00> : vector<8x32xf32>
    %18 = tpu.matmul %15, %17, %cst_12 {dimension_numbers = #tpu.dot_dimension_numbers<[1], [0], [0], [1], [0, 0, 1, 1], [], []>} : vector<8x32xf32>, vector<32x32xf32>, vector<8x32xf32> -> vector<8x32xf32>
    %c0_13 = arith.constant 0 : index
    %c0_14 = arith.constant 0 : index
    %c0_15 = arith.constant 0 : index
    %19 = vector.load %arg6[%c0_13, %c0_14, %c0_15] : memref<3x1x32xf32, #tpu.memory_space<vmem>>, vector<1x1x32xf32>
    %20 = vector.shape_cast %19 : vector<1x1x32xf32> to vector<1x32xf32>
    %21 = vector.broadcast %20 : vector<1x32xf32> to vector<8x32xf32>
    %22 = arith.addf %18, %21 : vector<8x32xf32>
    %cst_16 = arith.constant 5.000000e-01 : f32
    %23 = vector.broadcast %cst_16 : f32 to vector<8x32xf32>
    %24 = arith.mulf %23, %22 : vector<8x32xf32>
    %cst_17 = arith.constant 0.707106769 : f32
    %25 = vector.broadcast %cst_17 : f32 to vector<8x32xf32>
    %26 = arith.mulf %22, %25 : vector<8x32xf32>
    %27 = math.erf %26 : vector<8x32xf32>
    %cst_18 = arith.constant 1.000000e+00 : f32
    %28 = vector.broadcast %cst_18 : f32 to vector<8x32xf32>
    %29 = arith.addf %28, %27 : vector<8x32xf32>
    %30 = arith.mulf %24, %29 : vector<8x32xf32>
    %c0_19 = arith.constant 0 : index
    %c0_20 = arith.constant 0 : index
    %c0_21 = arith.constant 0 : index
    %31 = vector.load %arg7[%c0_19, %c0_20, %c0_21] : memref<3x32x8xf32, #tpu.memory_space<vmem>>, vector<1x32x8xf32>
    %32 = vector.shape_cast %31 : vector<1x32x8xf32> to vector<32x8xf32>
    %cst_22 = arith.constant dense<0.000000e+00> : vector<8x8xf32>
    %33 = tpu.matmul %30, %32, %cst_22 {dimension_numbers = #tpu.dot_dimension_numbers<[1], [0], [0], [1], [0, 0, 1, 1], [], []>} : vector<8x32xf32>, vector<32x8xf32>, vector<8x8xf32> -> vector<8x8xf32>
    %c0_23 = arith.constant 0 : index
    %c0_24 = arith.constant 0 : index
    %c0_25 = arith.constant 0 : index
    %34 = vector.load %arg8[%c0_23, %c0_24, %c0_25] : memref<3x1x8xf32, #tpu.memory_space<vmem>>, vector<1x1x8xf32>
    %35 = vector.shape_cast %34 : vector<1x1x8xf32> to vector<1x8xf32>
    %36 = vector.broadcast %35 : vector<1x8xf32> to vector<8x8xf32>
    %37 = arith.addf %33, %36 : vector<8x8xf32>
    %38 = vector.extract_strided_slice %2 {offsets = [0, 32], sizes = [8, 32], strides = [1, 1]} : vector<8x96xf32> to vector<8x32xf32>
    %c1 = arith.constant 1 : index
    %c0_26 = arith.constant 0 : index
    %c0_27 = arith.constant 0 : index
    %39 = vector.load %arg4[%c1, %c0_26, %c0_27] : memref<3x1x32xf32, #tpu.memory_space<vmem>>, vector<1x1x32xf32>
    %40 = vector.shape_cast %39 : vector<1x1x32xf32> to vector<1x32xf32>
    %41 = vector.broadcast %40 : vector<1x32xf32> to vector<8x32xf32>
    %42 = arith.addf %38, %41 : vector<8x32xf32>
    %cst_28 = arith.constant 5.000000e-01 : f32
    %43 = vector.broadcast %cst_28 : f32 to vector<8x32xf32>
    %44 = arith.mulf %43, %42 : vector<8x32xf32>
    %cst_29 = arith.constant 0.707106769 : f32
    %45 = vector.broadcast %cst_29 : f32 to vector<8x32xf32>
    %46 = arith.mulf %42, %45 : vector<8x32xf32>
    %47 = math.erf %46 : vector<8x32xf32>
    %cst_30 = arith.constant 1.000000e+00 : f32
    %48 = vector.broadcast %cst_30 : f32 to vector<8x32xf32>
    %49 = arith.addf %48, %47 : vector<8x32xf32>
    %50 = arith.mulf %44, %49 : vector<8x32xf32>
    %c1_31 = arith.constant 1 : index
    %c0_32 = arith.constant 0 : index
    %c0_33 = arith.constant 0 : index
    %51 = vector.load %arg5[%c1_31, %c0_32, %c0_33] : memref<3x32x32xf32, #tpu.memory_space<vmem>>, vector<1x32x32xf32>
    %52 = vector.shape_cast %51 : vector<1x32x32xf32> to vector<32x32xf32>
    %cst_34 = arith.constant dense<0.000000e+00> : vector<8x32xf32>
    %53 = tpu.matmul %50, %52, %cst_34 {dimension_numbers = #tpu.dot_dimension_numbers<[1], [0], [0], [1], [0, 0, 1, 1], [], []>} : vector<8x32xf32>, vector<32x32xf32>, vector<8x32xf32> -> vector<8x32xf32>
    %c1_35 = arith.constant 1 : index
    %c0_36 = arith.constant 0 : index
    %c0_37 = arith.constant 0 : index
    %54 = vector.load %arg6[%c1_35, %c0_36, %c0_37] : memref<3x1x32xf32, #tpu.memory_space<vmem>>, vector<1x1x32xf32>
    %55 = vector.shape_cast %54 : vector<1x1x32xf32> to vector<1x32xf32>
    %56 = vector.broadcast %55 : vector<1x32xf32> to vector<8x32xf32>
    %57 = arith.addf %53, %56 : vector<8x32xf32>
    %cst_38 = arith.constant 5.000000e-01 : f32
    %58 = vector.broadcast %cst_38 : f32 to vector<8x32xf32>
    %59 = arith.mulf %58, %57 : vector<8x32xf32>
    %cst_39 = arith.constant 0.707106769 : f32
    %60 = vector.broadcast %cst_39 : f32 to vector<8x32xf32>
    %61 = arith.mulf %57, %60 : vector<8x32xf32>
    %62 = math.erf %61 : vector<8x32xf32>
    %cst_40 = arith.constant 1.000000e+00 : f32
    %63 = vector.broadcast %cst_40 : f32 to vector<8x32xf32>
    %64 = arith.addf %63, %62 : vector<8x32xf32>
    %65 = arith.mulf %59, %64 : vector<8x32xf32>
    %c1_41 = arith.constant 1 : index
    %c0_42 = arith.constant 0 : index
    %c0_43 = arith.constant 0 : index
    %66 = vector.load %arg7[%c1_41, %c0_42, %c0_43] : memref<3x32x8xf32, #tpu.memory_space<vmem>>, vector<1x32x8xf32>
    %67 = vector.shape_cast %66 : vector<1x32x8xf32> to vector<32x8xf32>
    %cst_44 = arith.constant dense<0.000000e+00> : vector<8x8xf32>
    %68 = tpu.matmul %65, %67, %cst_44 {dimension_numbers = #tpu.dot_dimension_numbers<[1], [0], [0], [1], [0, 0, 1, 1], [], []>} : vector<8x32xf32>, vector<32x8xf32>, vector<8x8xf32> -> vector<8x8xf32>
    %c1_45 = arith.constant 1 : index
    %c0_46 = arith.constant 0 : index
    %c0_47 = arith.constant 0 : index
    %69 = vector.load %arg8[%c1_45, %c0_46, %c0_47] : memref<3x1x8xf32, #tpu.memory_space<vmem>>, vector<1x1x8xf32>
    %70 = vector.shape_cast %69 : vector<1x1x8xf32> to vector<1x8xf32>
    %71 = vector.broadcast %70 : vector<1x8xf32> to vector<8x8xf32>
    %72 = arith.addf %68, %71 : vector<8x8xf32>
    %73 = vector.extract_strided_slice %2 {offsets = [0, 64], sizes = [8, 32], strides = [1, 1]} : vector<8x96xf32> to vector<8x32xf32>
    %c2 = arith.constant 2 : index
    %c0_48 = arith.constant 0 : index
    %c0_49 = arith.constant 0 : index
    %74 = vector.load %arg4[%c2, %c0_48, %c0_49] : memref<3x1x32xf32, #tpu.memory_space<vmem>>, vector<1x1x32xf32>
    %75 = vector.shape_cast %74 : vector<1x1x32xf32> to vector<1x32xf32>
    %76 = vector.broadcast %75 : vector<1x32xf32> to vector<8x32xf32>
    %77 = arith.addf %73, %76 : vector<8x32xf32>
    %cst_50 = arith.constant 5.000000e-01 : f32
    %78 = vector.broadcast %cst_50 : f32 to vector<8x32xf32>
    %79 = arith.mulf %78, %77 : vector<8x32xf32>
    %cst_51 = arith.constant 0.707106769 : f32
    %80 = vector.broadcast %cst_51 : f32 to vector<8x32xf32>
    %81 = arith.mulf %77, %80 : vector<8x32xf32>
    %82 = math.erf %81 : vector<8x32xf32>
    %cst_52 = arith.constant 1.000000e+00 : f32
    %83 = vector.broadcast %cst_52 : f32 to vector<8x32xf32>
    %84 = arith.addf %83, %82 : vector<8x32xf32>
    %85 = arith.mulf %79, %84 : vector<8x32xf32>
    %c2_53 = arith.constant 2 : index
    %c0_54 = arith.constant 0 : index
    %c0_55 = arith.constant 0 : index
    %86 = vector.load %arg5[%c2_53, %c0_54, %c0_55] : memref<3x32x32xf32, #tpu.memory_space<vmem>>, vector<1x32x32xf32>
    %87 = vector.shape_cast %86 : vector<1x32x32xf32> to vector<32x32xf32>
    %cst_56 = arith.constant dense<0.000000e+00> : vector<8x32xf32>
    %88 = tpu.matmul %85, %87, %cst_56 {dimension_numbers = #tpu.dot_dimension_numbers<[1], [0], [0], [1], [0, 0, 1, 1], [], []>} : vector<8x32xf32>, vector<32x32xf32>, vector<8x32xf32> -> vector<8x32xf32>
    %c2_57 = arith.constant 2 : index
    %c0_58 = arith.constant 0 : index
    %c0_59 = arith.constant 0 : index
    %89 = vector.load %arg6[%c2_57, %c0_58, %c0_59] : memref<3x1x32xf32, #tpu.memory_space<vmem>>, vector<1x1x32xf32>
    %90 = vector.shape_cast %89 : vector<1x1x32xf32> to vector<1x32xf32>
    %91 = vector.broadcast %90 : vector<1x32xf32> to vector<8x32xf32>
    %92 = arith.addf %88, %91 : vector<8x32xf32>
    %cst_60 = arith.constant 5.000000e-01 : f32
    %93 = vector.broadcast %cst_60 : f32 to vector<8x32xf32>
    %94 = arith.mulf %93, %92 : vector<8x32xf32>
    %cst_61 = arith.constant 0.707106769 : f32
    %95 = vector.broadcast %cst_61 : f32 to vector<8x32xf32>
    %96 = arith.mulf %92, %95 : vector<8x32xf32>
    %97 = math.erf %96 : vector<8x32xf32>
    %cst_62 = arith.constant 1.000000e+00 : f32
    %98 = vector.broadcast %cst_62 : f32 to vector<8x32xf32>
    %99 = arith.addf %98, %97 : vector<8x32xf32>
    %100 = arith.mulf %94, %99 : vector<8x32xf32>
    %c2_63 = arith.constant 2 : index
    %c0_64 = arith.constant 0 : index
    %c0_65 = arith.constant 0 : index
    %101 = vector.load %arg7[%c2_63, %c0_64, %c0_65] : memref<3x32x8xf32, #tpu.memory_space<vmem>>, vector<1x32x8xf32>
    %102 = vector.shape_cast %101 : vector<1x32x8xf32> to vector<32x8xf32>
    %cst_66 = arith.constant dense<0.000000e+00> : vector<8x8xf32>
    %103 = tpu.matmul %100, %102, %cst_66 {dimension_numbers = #tpu.dot_dimension_numbers<[1], [0], [0], [1], [0, 0, 1, 1], [], []>} : vector<8x32xf32>, vector<32x8xf32>, vector<8x8xf32> -> vector<8x8xf32>
    %c2_67 = arith.constant 2 : index
    %c0_68 = arith.constant 0 : index
    %c0_69 = arith.constant 0 : index
    %104 = vector.load %arg8[%c2_67, %c0_68, %c0_69] : memref<3x1x8xf32, #tpu.memory_space<vmem>>, vector<1x1x8xf32>
    %105 = vector.shape_cast %104 : vector<1x1x8xf32> to vector<1x8xf32>
    %106 = vector.broadcast %105 : vector<1x8xf32> to vector<8x8xf32>
    %107 = arith.addf %103, %106 : vector<8x8xf32>
    %108 = tpu.concatenate %37, %72, %107 in 1 : vector<8x8xf32>, vector<8x8xf32>, vector<8x8xf32> -> vector<8x24xf32>
    %c0_70 = arith.constant 0 : index
    %c0_71 = arith.constant 0 : index
    %109 = vector.load %arg9[%c0_70, %c0_71] : memref<8x24xf32, #tpu.memory_space<vmem>>, vector<8x24xf32>
    tpu.vector_store %arg9[%c0_70, %c0_71], %108 {strides = array<i32>} : memref<8x24xf32, #tpu.memory_space<vmem>>, vector<8x24xf32>,
    return
  }
  func.func @transform_0(%arg0: i32, %arg1: i32) -> (i32, i32) {
    %c0_i32 = arith.constant 0 : i32
    %c0_i32_0 = arith.constant 0 : i32
    return %arg1, %c0_i32 : i32, i32
  }
  func.func @transform_1(%arg0: i32, %arg1: i32) -> (i32, i32) {
    %c0_i32 = arith.constant 0 : i32
    %c0_i32_0 = arith.constant 0 : i32
    return %c0_i32, %arg0 : i32, i32
  }
  func.func @transform_2(%arg0: i32, %arg1: i32) -> (i32, i32, i32) {
    %c0_i32 = arith.constant 0 : i32
    %c0_i32_0 = arith.constant 0 : i32
    %c0_i32_1 = arith.constant 0 : i32
    return %arg0, %c0_i32, %c0_i32_0 : i32, i32, i32
  }
  func.func @transform_3(%arg0: i32, %arg1: i32) -> (i32, i32, i32) {
    %c0_i32 = arith.constant 0 : i32
    %c0_i32_0 = arith.constant 0 : i32
    %c0_i32_1 = arith.constant 0 : i32
    return %arg0, %c0_i32, %c0_i32_0 : i32, i32, i32
  }
  func.func @transform_4(%arg0: i32, %arg1: i32) -> (i32, i32, i32) {
    %c0_i32 = arith.constant 0 : i32
    %c0_i32_0 = arith.constant 0 : i32
    %c0_i32_1 = arith.constant 0 : i32
    return %arg0, %c0_i32, %c0_i32_0 : i32, i32, i32
  }
  func.func @transform_5(%arg0: i32, %arg1: i32) -> (i32, i32, i32) {
    %c0_i32 = arith.constant 0 : i32
    %c0_i32_0 = arith.constant 0 : i32
    %c0_i32_1 = arith.constant 0 : i32
    return %arg0, %c0_i32, %c0_i32_0 : i32, i32, i32
  }
  func.func @transform_6(%arg0: i32, %arg1: i32) -> (i32, i32, i32) {
    %c0_i32 = arith.constant 0 : i32
    %c0_i32_0 = arith.constant 0 : i32
    %c0_i32_1 = arith.constant 0 : i32
    return %arg0, %c0_i32, %c0_i32_0 : i32, i32, i32
  }
  func.func @transform_7(%arg0: i32, %arg1: i32) -> (i32, i32) {
    %c0_i32 = arith.constant 0 : i32
    return %arg1, %arg0 : i32, i32
  }
}

</mosaic_0001>

<llo_original>
// kernel: mlpc_forward.1
$region0: #{mlpc_forward.1}
  #allocation0 [shape = 'u32[]', space=smem, size = 0x4, offset = 0x4, fixed_abs, tag = 'smem constant byte address 0x4 - core index']
  #allocation1 [shape = 'u32[144,128]{1,0:T(1,128)}', space=vmem, size = 0x12000, scoped, tag = 'internal scratch']
  %s0 = inlined_call_operand.vmem [shape: f32[8,16], index: 0, kind: input, shape index: {}]
  %s1 = inlined_call_operand.vmem [shape: f32[16,96], index: 1, kind: input, shape index: {}]
  %s2 = inlined_call_operand.vmem [shape: f32[3,1,32], index: 2, kind: input, shape index: {}]
  %s3 = inlined_call_operand.vmem [shape: f32[3,32,32], index: 3, kind: input, shape index: {}]
  %s4 = inlined_call_operand.vmem [shape: f32[3,1,32], index: 4, kind: input, shape index: {}]
  %s5 = inlined_call_operand.vmem [shape: f32[3,32,8], index: 5, kind: input, shape index: {}]
  %s6 = inlined_call_operand.vmem [shape: f32[3,1,8], index: 6, kind: input, shape index: {}]
  %s7 = inlined_call_operand.vmem [shape: f32[8,24], index: 7, kind: output, shape index: {}]
  %s8 = sld [smem:[#allocation0]]
  $region38: #{mlpc_forward.1} parent=0
    _
  %s10 = ssub.s32 1, %s8
  %s11 = scalar_select 0, %s10, %s8
  // Predicated region
  $region2: #{mlpc_forward.1} parent=0 // pred_check
    _
  $region3: #{mlpc_forward.1} parent=0 // pred_check_branch
    %13 = sbr.rel (0) target = $region5
  $region4: #{mlpc_forward.1} parent=0 // pred_region
    _
  $region5: #{mlpc_forward.1} parent=0 // pred_fallthru
    _
  // Predicated region
  $region6: #{mlpc_forward.1} parent=0 // pred_check
    _
  $region7: #{mlpc_forward.1} parent=0 // pred_check_branch
    %15 = sbr.rel (0) target = $region9
  $region8: #{mlpc_forward.1} parent=0 // pred_region
    _
  $region9: #{mlpc_forward.1} parent=0 // pred_fallthru
    _
  // Predicated region
  $region10: #{mlpc_forward.1} parent=0 // pred_check
    _
  $region11: #{mlpc_forward.1} parent=0 // pred_check_branch
    %17 = sbr.rel (0) target = $region13
  $region12: #{mlpc_forward.1} parent=0 // pred_region
    _
  $region13: #{mlpc_forward.1} parent=0 // pred_fallthru
    _
  // Predicated region
  $region14: #{mlpc_forward.1} parent=0 // pred_check
    _
  $region15: #{mlpc_forward.1} parent=0 // pred_check_branch
    %19 = sbr.rel (0) target = $region17
  $region16: #{mlpc_forward.1} parent=0 // pred_region
    _
  $region17: #{mlpc_forward.1} parent=0 // pred_fallthru
    _
  // Predicated region
  $region18: #{mlpc_forward.1} parent=0 // pred_check
    _
  $region19: #{mlpc_forward.1} parent=0 // pred_check_branch
    %21 = sbr.rel (0) target = $region21
  $region20: #{mlpc_forward.1} parent=0 // pred_region
    _
  $region21: #{mlpc_forward.1} parent=0 // pred_fallthru
    _
  // Predicated region
  $region22: #{mlpc_forward.1} parent=0 // pred_check
    _
  $region23: #{mlpc_forward.1} parent=0 // pred_check_branch
    %23 = sbr.rel (0) target = $region25
  $region24: #{mlpc_forward.1} parent=0 // pred_region
    _
  $region25: #{mlpc_forward.1} parent=0 // pred_fallthru
    _
  // Predicated region
  $region26: #{mlpc_forward.1} parent=0 // pred_check
    _
  $region27: #{mlpc_forward.1} parent=0 // pred_check_branch
    %25 = sbr.rel (0) target = $region29
  $region28: #{mlpc_forward.1} parent=0 // pred_region
    _
  $region29: #{mlpc_forward.1} parent=0 // pred_fallthru
    _
  %v26 = vld [vmem:[%s0] sm:$0xff]
  %v27 = vld [vmem:[%s1] sm:$0xff]
  %v28 = vld [vmem:[%s1 + $0x8] sm:$0xff]
  %vm29 = vcmask 130048
  %v31 = vsel %vm29, %v26, 0
  %33 = vmatprep.subr.mxu0 0.0
  %34 = vmatpush1.msra.mxu0 %v27
  %35 = vmatprep.subr.mxu0 0.0
  %36 = vmatpush1.msra.mxu0 %v28
  %37 = vmatprep.subr.mxu0 0.0
  %38 = vmatpush1.msra.mxu0 0.0
  %39 = vmatprep.subr.mxu0 0.0
  %40 = vmatpush1.msra.mxu0 0.0
  %41 = vmatprep.subr.mxu0 0.0
  %42 = vmatpush1.msra.mxu0 0.0
  %43 = vmatprep.subr.mxu0 0.0
  %44 = vmatpush1.msra.mxu0 0.0
  %45 = vmatprep.subr.mxu0 0.0
  %46 = vmatpush1.msra.mxu0 0.0
  %47 = vmatprep.subr.mxu0 0.0
  %48 = vmatpush1.msra.mxu0 0.0
  %49 = vmatprep.subr.mxu0 0.0
  %50 = vmatpush1.msra.mxu0 0.0
  %51 = vmatprep.subr.mxu0 0.0
  %52 = vmatpush1.msra.mxu0 0.0
  %53 = vmatprep.subr.mxu0 0.0
  %54 = vmatpush1.msra.mxu0 0.0
  %55 = vmatprep.subr.mxu0 0.0
  %56 = vmatpush1.msra.mxu0 0.0
  %57 = vmatprep.subr.mxu0 0.0
  %58 = vmatpush1.msra.mxu0 0.0
  %59 = vmatprep.subr.mxu0 0.0
  %60 = vmatpush1.msra.mxu0 0.0
  %61 = vmatprep.subr.mxu0 0.0
  %62 = vmatpush1.msra.mxu0 0.0
  %63 = vmatprep.subr.mxu0 0.0
  %64 = vmatpush1.msra.mxu0 0.0
  %65 = vmatprep.subr.mxu0 0.0
  %66 = vmatpush1.msra.mxu0 0.0
  %67 = vmatprep.subr.mxu0 0.0
  %68 = vmatpush1.msra.mxu0 0.0
  %69 = vmatprep.subr.mxu0 0.0
  %70 = vmatpush1.msra.mxu0 0.0
  %71 = vmatprep.subr.mxu0 0.0
  %72 = vmatpush1.msra.mxu0 0.0
  %73 = vmatprep.subr.mxu0 0.0
  %74 = vmatpush1.msra.mxu0 0.0
  %75 = vmatprep.subr.mxu0 0.0
  %76 = vmatpush1.msra.mxu0 0.0
  %77 = vmatprep.subr.mxu0 0.0
  %78 = vmatpush1.msra.mxu0 0.0
  %79 = vmatprep.subr.mxu0 0.0
  %80 = vmatpush1.msra.mxu0 0.0
  %81 = vmatprep.subr.mxu0 0.0
  %82 = vmatpush1.msra.mxu0 0.0
  %83 = vmatprep.subr.mxu0 0.0
  %84 = vmatpush1.msra.mxu0 0.0
  %85 = vmatprep.subr.mxu0 0.0
  %86 = vmatpush1.msra.mxu0 0.0
  %87 = vmatprep.subr.mxu0 0.0
  %88 = vmatpush1.msra.mxu0 0.0
  %89 = vmatprep.subr.mxu0 0.0
  %90 = vmatpush1.msra.mxu0 0.0
  %91 = vmatprep.subr.mxu0 0.0
  %92 = vmatpush1.msra.mxu0 0.0
  %93 = vmatprep.subr.mxu0 0.0
  %94 = vmatpush1.msra.mxu0 0.0
  %95 = vmatprep.subr.mxu0 0.0
  %96 = vmatpush1.msra.mxu0 0.0
  %97 = vmatprep.mubr.f32.mxu0 0.0
  %98 = vmatmul.mubr.f32.gmra.mrb[0].mxu0 %v31
  %v99 = vpop.f32.mrb[0].mxu0
  %v100 = vadd.f32 0.0, %v99
  %v101 = vpop.f32.mrb[0].mxu0
  %102 = vdwg.mxu0
  %v103 = vld [vmem:[%s2] sm:$0x1]
  %v105 = vlaneseq
  %v106 = vshrl.u32 %v105, 7
  %v107 = vsub.s32 0, %v106
  %v108 = vrot.slane %v103, %v107
  %v110 = vadd.f32 %v100, %v108
  %v111 = vmul.f32 %v110, 0.5
  %v112 = vmul.f32 %v110, 0.70710677
  %v113 = verf.f32.pop %v112
  %v114 = vadd.f32 %v113, 1.0
  %v115 = vmul.f32 %v111, %v114
  %v116 = vld [vmem:[%s3] sm:$0xff]
  %v117 = vld [vmem:[%s3 + $0x8] sm:$0xff]
  %v118 = vld [vmem:[%s3 + $0x10] sm:$0xff]
  %v119 = vld [vmem:[%s3 + $0x18] sm:$0xff]
  %v120 = vld [vmem:[%s4] sm:$0x1]
  %v122 = vlaneseq
  %v123 = vshrl.u32 %v122, 7
  %v124 = vsub.s32 0, %v123
  %v125 = vrot.slane %v120, %v124
  %vm127 = vcmask 261120
  %v129 = vsel %vm127, %v115, 0
  %131 = vmatprep.subr.mxu0 0.0
  %132 = vmatpush1.msra.mxu0 %v116
  %133 = vmatprep.subr.mxu0 0.0
  %134 = vmatpush1.msra.mxu0 %v117
  %135 = vmatprep.subr.mxu0 0.0
  %136 = vmatpush1.msra.mxu0 %v118
  %137 = vmatprep.subr.mxu0 0.0
  %138 = vmatpush1.msra.mxu0 %v119
  %139 = vmatprep.subr.mxu0 0.0
  %140 = vmatpush1.msra.mxu0 0.0
  %141 = vmatprep.subr.mxu0 0.0
  %142 = vmatpush1.msra.mxu0 0.0
  %143 = vmatprep.subr.mxu0 0.0
  %144 = vmatpush1.msra.mxu0 0.0
  %145 = vmatprep.subr.mxu0 0.0
  %146 = vmatpush1.msra.mxu0 0.0
  %147 = vmatprep.subr.mxu0 0.0
  %148 = vmatpush1.msra.mxu0 0.0
  %149 = vmatprep.subr.mxu0 0.0
  %150 = vmatpush1.msra.mxu0 0.0
  %151 = vmatprep.subr.mxu0 0.0
  %152 = vmatpush1.msra.mxu0 0.0
  %153 = vmatprep.subr.mxu0 0.0
  %154 = vmatpush1.msra.mxu0 0.0
  %155 = vmatprep.subr.mxu0 0.0
  %156 = vmatpush1.msra.mxu0 0.0
  %157 = vmatprep.subr.mxu0 0.0
  %158 = vmatpush1.msra.mxu0 0.0
  %159 = vmatprep.subr.mxu0 0.0
  %160 = vmatpush1.msra.mxu0 0.0
  %161 = vmatprep.subr.mxu0 0.0
  %162 = vmatpush1.msra.mxu0 0.0
  %163 = vmatprep.subr.mxu0 0.0
  %164 = vmatpush1.msra.mxu0 0.0
  %165 = vmatprep.subr.mxu0 0.0
  %166 = vmatpush1.msra.mxu0 0.0
  %167 = vmatprep.subr.mxu0 0.0
  %168 = vmatpush1.msra.mxu0 0.0
  %169 = vmatprep.subr.mxu0 0.0
  %170 = vmatpush1.msra.mxu0 0.0
  %171 = vmatprep.subr.mxu0 0.0
  %172 = vmatpush1.msra.mxu0 0.0
  %173 = vmatprep.subr.mxu0 0.0
  %174 = vmatpush1.msra.mxu0 0.0
  %175 = vmatprep.subr.mxu0 0.0
  %176 = vmatpush1.msra.mxu0 0.0
  %177 = vmatprep.subr.mxu0 0.0
  %178 = vmatpush1.msra.mxu0 0.0
  %179 = vmatprep.subr.mxu0 0.0
  %180 = vmatpush1.msra.mxu0 0.0
  %181 = vmatprep.subr.mxu0 0.0
  %182 = vmatpush1.msra.mxu0 0.0
  %183 = vmatprep.subr.mxu0 0.0
  %184 = vmatpush1.msra.mxu0 0.0
  %185 = vmatprep.subr.mxu0 0.0
  %186 = vmatpush1.msra.mxu0 0.0
  %187 = vmatprep.subr.mxu0 0.0
  %188 = vmatpush1.msra.mxu0 0.0
  %189 = vmatprep.subr.mxu0 0.0
  %190 = vmatpush1.msra.mxu0 0.0
  %191 = vmatprep.subr.mxu0 0.0
  %192 = vmatpush1.msra.mxu0 0.0
  %193 = vmatprep.subr.mxu0 0.0
  %194 = vmatpush1.msra.mxu0 0.0
  %195 = vmatprep.mubr.f32.mxu0 0.0
  %196 = vmatmul.mubr.f32.gmra.mrb[0].mxu0 %v129
  %v197 = vpop.f32.mrb[0].mxu0
  %v198 = vadd.f32 %v125, %v197
  %v199 = vpop.f32.mrb[0].mxu0
  %200 = vdwg.mxu0
  %v201 = vmul.f32 %v198, 0.5
  %v202 = vmul.f32 %v198, 0.70710677
  %v203 = verf.f32.pop %v202
  %v204 = vadd.f32 %v203, 1.0
  %v205 = vmul.f32 %v201, %v204
  %v206 = vld [vmem:[%s5] sm:$0xff]
  %v207 = vld [vmem:[%s5 + $0x8] sm:$0xff]
  %v208 = vld [vmem:[%s5 + $0x10] sm:$0xff]
  %v209 = vld [vmem:[%s5 + $0x18] sm:$0xff]
  %v210 = vld [vmem:[%s6] sm:$0x1]
  %v212 = vlaneseq
  %v213 = vshrl.u32 %v212, 7
  %v214 = vsub.s32 0, %v213
  %v215 = vrot.slane %v210, %v214
  %v218 = vsel %vm127, %v205, 0
  %220 = vmatprep.subr.mxu0 0.0
  %221 = vmatpush1.msra.mxu0 %v206
  %222 = vmatprep.subr.mxu0 0.0
  %223 = vmatpush1.msra.mxu0 %v207
  %224 = vmatprep.subr.mxu0 0.0
  %225 = vmatpush1.msra.mxu0 %v208
  %226 = vmatprep.subr.mxu0 0.0
  %227 = vmatpush1.msra.mxu0 %v209
  %228 = vmatprep.subr.mxu0 0.0
  %229 = vmatpush1.msra.mxu0 0.0
  %230 = vmatprep.subr.mxu0 0.0
  %231 = vmatpush1.msra.mxu0 0.0
  %232 = vmatprep.subr.mxu0 0.0
  %233 = vmatpush1.msra.mxu0 0.0
  %234 = vmatprep.subr.mxu0 0.0
  %235 = vmatpush1.msra.mxu0 0.0
  %236 = vmatprep.subr.mxu0 0.0
  %237 = vmatpush1.msra.mxu0 0.0
  %238 = vmatprep.subr.mxu0 0.0
  %239 = vmatpush1.msra.mxu0 0.0
  %240 = vmatprep.subr.mxu0 0.0
  %241 = vmatpush1.msra.mxu0 0.0
  %242 = vmatprep.subr.mxu0 0.0
  %243 = vmatpush1.msra.mxu0 0.0
  %244 = vmatprep.subr.mxu0 0.0
  %245 = vmatpush1.msra.mxu0 0.0
  %246 = vmatprep.subr.mxu0 0.0
  %247 = vmatpush1.msra.mxu0 0.0
  %248 = vmatprep.subr.mxu0 0.0
  %249 = vmatpush1.msra.mxu0 0.0
  %250 = vmatprep.subr.mxu0 0.0
  %251 = vmatpush1.msra.mxu0 0.0
  %252 = vmatprep.subr.mxu0 0.0
  %253 = vmatpush1.msra.mxu0 0.0
  %254 = vmatprep.subr.mxu0 0.0
  %255 = vmatpush1.msra.mxu0 0.0
  %256 = vmatprep.subr.mxu0 0.0
  %257 = vmatpush1.msra.mxu0 0.0
  %258 = vmatprep.subr.mxu0 0.0
  %259 = vmatpush1.msra.mxu0 0.0
  %260 = vmatprep.subr.mxu0 0.0
  %261 = vmatpush1.msra.mxu0 0.0
  %262 = vmatprep.subr.mxu0 0.0
  %263 = vmatpush1.msra.mxu0 0.0
  %264 = vmatprep.subr.mxu0 0.0
  %265 = vmatpush1.msra.mxu0 0.0
  %266 = vmatprep.subr.mxu0 0.0
  %267 = vmatpush1.msra.mxu0 0.0
  %268 = vmatprep.subr.mxu0 0.0
  %269 = vmatpush1.msra.mxu0 0.0
  %270 = vmatprep.subr.mxu0 0.0
  %271 = vmatpush1.msra.mxu0 0.0
  %272 = vmatprep.subr.mxu0 0.0
  %273 = vmatpush1.msra.mxu0 0.0
  %274 = vmatprep.subr.mxu0 0.0
  %275 = vmatpush1.msra.mxu0 0.0
  %276 = vmatprep.subr.mxu0 0.0
  %277 = vmatpush1.msra.mxu0 0.0
  %278 = vmatprep.subr.mxu0 0.0
  %279 = vmatpush1.msra.mxu0 0.0
  %280 = vmatprep.subr.mxu0 0.0
  %281 = vmatpush1.msra.mxu0 0.0
  %282 = vmatprep.subr.mxu0 0.0
  %283 = vmatpush1.msra.mxu0 0.0
  %284 = vmatprep.mubr.f32.mxu0 0.0
  %285 = vmatmul.mubr.f32.gmra.mrb[0].mxu0 %v218
  %v286 = vpop.f32.mrb[0].mxu0
  %v287 = vadd.f32 %v215, %v286
  %v288 = vpop.f32.mrb[0].mxu0
  %289 = vdwg.mxu0
  %s290 = scalar_lea.vmem %s2, 1
  %v291 = vld [vmem:[%s290] sm:$0x1]
  %v293 = vlaneseq
  %v294 = vshrl.u32 %v293, 7
  %v295 = vsub.s32 0, %v294
  %v296 = vrot.slane %v291, %v295
  %297 = vrot.lane.b32.xlu0 %v296, 32
  %v298 = vpop.permute.xlu0 %297
  %v300 = vadd.f32 %v100, %v298
  %v301 = vmul.f32 %v300, 0.5
  %v302 = vmul.f32 %v300, 0.70710677
  %v303 = verf.f32.pop %v302
  %v304 = vadd.f32 %v303, 1.0
  %v305 = vmul.f32 %v301, %v304
  %s306 = scalar_lea.vmem %s3, 32
  %v307 = vld [vmem:[%s306] sm:$0xff]
  %v308 = vld [vmem:[%s306 + $0x8] sm:$0xff]
  %v309 = vld [vmem:[%s306 + $0x10] sm:$0xff]
  %v310 = vld [vmem:[%s306 + $0x18] sm:$0xff]
  %s311 = scalar_lea.vmem %s4, 1
  %v312 = vld [vmem:[%s311] sm:$0x1]
  %v314 = vlaneseq
  %v315 = vshrl.u32 %v314, 7
  %v316 = vsub.s32 0, %v315
  %v317 = vrot.slane %v312, %v316
  %320 = vrot.lane.b32.xlu0 %v305, 96
  %v321 = vpop.permute.xlu0 %320
  %v322 = vsel %vm127, %v321, 0
  %324 = vmatprep.subr.mxu0 0.0
  %325 = vmatpush1.msra.mxu0 %v307
  %326 = vmatprep.subr.mxu0 0.0
  %327 = vmatpush1.msra.mxu0 %v308
  %328 = vmatprep.subr.mxu0 0.0
  %329 = vmatpush1.msra.mxu0 %v309
  %330 = vmatprep.subr.mxu0 0.0
  %331 = vmatpush1.msra.mxu0 %v310
  %332 = vmatprep.subr.mxu0 0.0
  %333 = vmatpush1.msra.mxu0 0.0
  %334 = vmatprep.subr.mxu0 0.0
  %335 = vmatpush1.msra.mxu0 0.0
  %336 = vmatprep.subr.mxu0 0.0
  %337 = vmatpush1.msra.mxu0 0.0
  %338 = vmatprep.subr.mxu0 0.0
  %339 = vmatpush1.msra.mxu0 0.0
  %340 = vmatprep.subr.mxu0 0.0
  %341 = vmatpush1.msra.mxu0 0.0
  %342 = vmatprep.subr.mxu0 0.0
  %343 = vmatpush1.msra.mxu0 0.0
  %344 = vmatprep.subr.mxu0 0.0
  %345 = vmatpush1.msra.mxu0 0.0
  %346 = vmatprep.subr.mxu0 0.0
  %347 = vmatpush1.msra.mxu0 0.0
  %348 = vmatprep.subr.mxu0 0.0
  %349 = vmatpush1.msra.mxu0 0.0
  %350 = vmatprep.subr.mxu0 0.0
  %351 = vmatpush1.msra.mxu0 0.0
  %352 = vmatprep.subr.mxu0 0.0
  %353 = vmatpush1.msra.mxu0 0.0
  %354 = vmatprep.subr.mxu0 0.0
  %355 = vmatpush1.msra.mxu0 0.0
  %356 = vmatprep.subr.mxu0 0.0
  %357 = vmatpush1.msra.mxu0 0.0
  %358 = vmatprep.subr.mxu0 0.0
  %359 = vmatpush1.msra.mxu0 0.0
  %360 = vmatprep.subr.mxu0 0.0
  %361 = vmatpush1.msra.mxu0 0.0
  %362 = vmatprep.subr.mxu0 0.0
  %363 = vmatpush1.msra.mxu0 0.0
  %364 = vmatprep.subr.mxu0 0.0
  %365 = vmatpush1.msra.mxu0 0.0
  %366 = vmatprep.subr.mxu0 0.0
  %367 = vmatpush1.msra.mxu0 0.0
  %368 = vmatprep.subr.mxu0 0.0
  %369 = vmatpush1.msra.mxu0 0.0
  %370 = vmatprep.subr.mxu0 0.0
  %371 = vmatpush1.msra.mxu0 0.0
  %372 = vmatprep.subr.mxu0 0.0
  %373 = vmatpush1.msra.mxu0 0.0
  %374 = vmatprep.subr.mxu0 0.0
  %375 = vmatpush1.msra.mxu0 0.0
  %376 = vmatprep.subr.mxu0 0.0
  %377 = vmatpush1.msra.mxu0 0.0
  %378 = vmatprep.subr.mxu0 0.0
  %379 = vmatpush1.msra.mxu0 0.0
  %380 = vmatprep.subr.mxu0 0.0
  %381 = vmatpush1.msra.mxu0 0.0
  %382 = vmatprep.subr.mxu0 0.0
  %383 = vmatpush1.msra.mxu0 0.0
  %384 = vmatprep.subr.mxu0 0.0
  %385 = vmatpush1.msra.mxu0 0.0
  %386 = vmatprep.subr.mxu0 0.0
  %387 = vmatpush1.msra.mxu0 0.0
  %388 = vmatprep.mubr.f32.mxu0 0.0
  %389 = vmatmul.mubr.f32.gmra.mrb[0].mxu0 %v322
  %v390 = vpop.f32.mrb[0].mxu0
  %v391 = vadd.f32 %v317, %v390
  %v392 = vpop.f32.mrb[0].mxu0
  %393 = vdwg.mxu0
  %v394 = vmul.f32 %v391, 0.5
  %v395 = vmul.f32 %v391, 0.70710677
  %v396 = verf.f32.pop %v395
  %v397 = vadd.f32 %v396, 1.0
  %v398 = vmul.f32 %v394, %v397
  %s399 = scalar_lea.vmem %s5, 32
  %v400 = vld [vmem:[%s399] sm:$0xff]
  %v401 = vld [vmem:[%s399 + $0x8] sm:$0xff]
  %v402 = vld [vmem:[%s399 + $0x10] sm:$0xff]
  %v403 = vld [vmem:[%s399 + $0x18] sm:$0xff]
  %s404 = scalar_lea.vmem %s6, 1
  %v405 = vld [vmem:[%s404] sm:$0x1]
  %v407 = vlaneseq
  %v408 = vshrl.u32 %v407, 7
  %v409 = vsub.s32 0, %v408
  %v410 = vrot.slane %v405, %v409
  %v413 = vsel %vm127, %v398, 0
  %415 = vmatprep.subr.mxu0 0.0
  %416 = vmatpush1.msra.mxu0 %v400
  %417 = vmatprep.subr.mxu0 0.0
  %418 = vmatpush1.msra.mxu0 %v401
  %419 = vmatprep.subr.mxu0 0.0
  %420 = vmatpush1.msra.mxu0 %v402
  %421 = vmatprep.subr.mxu0 0.0
  %422 = vmatpush1.msra.mxu0 %v403
  %423 = vmatprep.subr.mxu0 0.0
  %424 = vmatpush1.msra.mxu0 0.0
  %425 = vmatprep.subr.mxu0 0.0
  %426 = vmatpush1.msra.mxu0 0.0
  %427 = vmatprep.subr.mxu0 0.0
  %428 = vmatpush1.msra.mxu0 0.0
  %429 = vmatprep.subr.mxu0 0.0
  %430 = vmatpush1.msra.mxu0 0.0
  %431 = vmatprep.subr.mxu0 0.0
  %432 = vmatpush1.msra.mxu0 0.0
  %433 = vmatprep.subr.mxu0 0.0
  %434 = vmatpush1.msra.mxu0 0.0
  %435 = vmatprep.subr.mxu0 0.0
  %436 = vmatpush1.msra.mxu0 0.0
  %437 = vmatprep.subr.mxu0 0.0
  %438 = vmatpush1.msra.mxu0 0.0
  %439 = vmatprep.subr.mxu0 0.0
  %440 = vmatpush1.msra.mxu0 0.0
  %441 = vmatprep.subr.mxu0 0.0
  %442 = vmatpush1.msra.mxu0 0.0
  %443 = vmatprep.subr.mxu0 0.0
  %444 = vmatpush1.msra.mxu0 0.0
  %445 = vmatprep.subr.mxu0 0.0
  %446 = vmatpush1.msra.mxu0 0.0
  %447 = vmatprep.subr.mxu0 0.0
  %448 = vmatpush1.msra.mxu0 0.0
  %449 = vmatprep.subr.mxu0 0.0
  %450 = vmatpush1.msra.mxu0 0.0
  %451 = vmatprep.subr.mxu0 0.0
  %452 = vmatpush1.msra.mxu0 0.0
  %453 = vmatprep.subr.mxu0 0.0
  %454 = vmatpush1.msra.mxu0 0.0
  %455 = vmatprep.subr.mxu0 0.0
  %456 = vmatpush1.msra.mxu0 0.0
  %457 = vmatprep.subr.mxu0 0.0
  %458 = vmatpush1.msra.mxu0 0.0
  %459 = vmatprep.subr.mxu0 0.0
  %460 = vmatpush1.msra.mxu0 0.0
  %461 = vmatprep.subr.mxu0 0.0
  %462 = vmatpush1.msra.mxu0 0.0
  %463 = vmatprep.subr.mxu0 0.0
  %464 = vmatpush1.msra.mxu0 0.0
  %465 = vmatprep.subr.mxu0 0.0
  %466 = vmatpush1.msra.mxu0 0.0
  %467 = vmatprep.subr.mxu0 0.0
  %468 = vmatpush1.msra.mxu0 0.0
  %469 = vmatprep.subr.mxu0 0.0
  %470 = vmatpush1.msra.mxu0 0.0
  %471 = vmatprep.subr.mxu0 0.0
  %472 = vmatpush1.msra.mxu0 0.0
  %473 = vmatprep.subr.mxu0 0.0
  %474 = vmatpush1.msra.mxu0 0.0
  %475 = vmatprep.subr.mxu0 0.0
  %476 = vmatpush1.msra.mxu0 0.0
  %477 = vmatprep.subr.mxu0 0.0
  %478 = vmatpush1.msra.mxu0 0.0
  %479 = vmatprep.mubr.f32.mxu0 0.0
  %480 = vmatmul.mubr.f32.gmra.mrb[0].mxu0 %v413
  %v481 = vpop.f32.mrb[0].mxu0
  %v482 = vadd.f32 %v410, %v481
  %v483 = vpop.f32.mrb[0].mxu0
  %484 = vdwg.mxu0
  %s485 = scalar_lea.vmem %s2, 2
  %v486 = vld [vmem:[%s485] sm:$0x1]
  %v488 = vlaneseq
  %v489 = vshrl.u32 %v488, 7
  %v490 = vsub.s32 0, %v489
  %v491 = vrot.slane %v486, %v490
  %492 = vrot.lane.b32.xlu0 %v491, 64
  %v493 = vpop.permute.xlu0 %492
  %v495 = vadd.f32 %v100, %v493
  %v496 = vmul.f32 %v495, 0.5
  %v497 = vmul.f32 %v495, 0.70710677
  %v498 = verf.f32.pop %v497
  %v499 = vadd.f32 %v498, 1.0
  %v500 = vmul.f32 %v496, %v499
  %s501 = scalar_lea.vmem %s3, 64
  %v502 = vld [vmem:[%s501] sm:$0xff]
  %v503 = vld [vmem:[%s501 + $0x8] sm:$0xff]
  %v504 = vld [vmem:[%s501 + $0x10] sm:$0xff]
  %v505 = vld [vmem:[%s501 + $0x18] sm:$0xff]
  %s506 = scalar_lea.vmem %s4, 2
  %v507 = vld [vmem:[%s506] sm:$0x1]
  %v509 = vlaneseq
  %v510 = vshrl.u32 %v509, 7
  %v511 = vsub.s32 0, %v510
  %v512 = vrot.slane %v507, %v511
  %515 = vrot.lane.b32.xlu0 %v500, 64
  %v516 = vpop.permute.xlu0 %515
  %v517 = vsel %vm127, %v516, 0
  %519 = vmatprep.subr.mxu0 0.0
  %520 = vmatpush1.msra.mxu0 %v502
  %521 = vmatprep.subr.mxu0 0.0
  %522 = vmatpush1.msra.mxu0 %v503
  %523 = vmatprep.subr.mxu0 0.0
  %524 = vmatpush1.msra.mxu0 %v504
  %525 = vmatprep.subr.mxu0 0.0
  %526 = vmatpush1.msra.mxu0 %v505
  %527 = vmatprep.subr.mxu0 0.0
  %528 = vmatpush1.msra.mxu0 0.0
  %529 = vmatprep.subr.mxu0 0.0
  %530 = vmatpush1.msra.mxu0 0.0
  %531 = vmatprep.subr.mxu0 0.0
  %532 = vmatpush1.msra.mxu0 0.0
  %533 = vmatprep.subr.mxu0 0.0
  %534 = vmatpush1.msra.mxu0 0.0
  %535 = vmatprep.subr.mxu0 0.0
  %536 = vmatpush1.msra.mxu0 0.0
  %537 = vmatprep.subr.mxu0 0.0
  %538 = vmatpush1.msra.mxu0 0.0
  %539 = vmatprep.subr.mxu0 0.0
  %540 = vmatpush1.msra.mxu0 0.0
  %541 = vmatprep.subr.mxu0 0.0
  %542 = vmatpush1.msra.mxu0 0.0
  %543 = vmatprep.subr.mxu0 0.0
  %544 = vmatpush1.msra.mxu0 0.0
  %545 = vmatprep.subr.mxu0 0.0
  %546 = vmatpush1.msra.mxu0 0.0
  %547 = vmatprep.subr.mxu0 0.0
  %548 = vmatpush1.msra.mxu0 0.0
  %549 = vmatprep.subr.mxu0 0.0
  %550 = vmatpush1.msra.mxu0 0.0
  %551 = vmatprep.subr.mxu0 0.0
  %552 = vmatpush1.msra.mxu0 0.0
  %553 = vmatprep.subr.mxu0 0.0
  %554 = vmatpush1.msra.mxu0 0.0
  %555 = vmatprep.subr.mxu0 0.0
  %556 = vmatpush1.msra.mxu0 0.0
  %557 = vmatprep.subr.mxu0 0.0
  %558 = vmatpush1.msra.mxu0 0.0
  %559 = vmatprep.subr.mxu0 0.0
  %560 = vmatpush1.msra.mxu0 0.0
  %561 = vmatprep.subr.mxu0 0.0
  %562 = vmatpush1.msra.mxu0 0.0
  %563 = vmatprep.subr.mxu0 0.0
  %564 = vmatpush1.msra.mxu0 0.0
  %565 = vmatprep.subr.mxu0 0.0
  %566 = vmatpush1.msra.mxu0 0.0
  %567 = vmatprep.subr.mxu0 0.0
  %568 = vmatpush1.msra.mxu0 0.0
  %569 = vmatprep.subr.mxu0 0.0
  %570 = vmatpush1.msra.mxu0 0.0
  %571 = vmatprep.subr.mxu0 0.0
  %572 = vmatpush1.msra.mxu0 0.0
  %573 = vmatprep.subr.mxu0 0.0
  %574 = vmatpush1.msra.mxu0 0.0
  %575 = vmatprep.subr.mxu0 0.0
  %576 = vmatpush1.msra.mxu0 0.0
  %577 = vmatprep.subr.mxu0 0.0
  %578 = vmatpush1.msra.mxu0 0.0
  %579 = vmatprep.subr.mxu0 0.0
  %580 = vmatpush1.msra.mxu0 0.0
  %581 = vmatprep.subr.mxu0 0.0
  %582 = vmatpush1.msra.mxu0 0.0
  %583 = vmatprep.mubr.f32.mxu0 0.0
  %584 = vmatmul.mubr.f32.gmra.mrb[0].mxu0 %v517
  %v585 = vpop.f32.mrb[0].mxu0
  %v586 = vadd.f32 %v512, %v585
  %v587 = vpop.f32.mrb[0].mxu0
  %588 = vdwg.mxu0
  %v589 = vmul.f32 %v586, 0.5
  %v590 = vmul.f32 %v586, 0.70710677
  %v591 = verf.f32.pop %v590
  %v592 = vadd.f32 %v591, 1.0
  %v593 = vmul.f32 %v589, %v592
  %s594 = scalar_lea.vmem %s5, 64
  %v595 = vld [vmem:[%s594] sm:$0xff]
  %v596 = vld [vmem:[%s594 + $0x8] sm:$0xff]
  %v597 = vld [vmem:[%s594 + $0x10] sm:$0xff]
  %v598 = vld [vmem:[%s594 + $0x18] sm:$0xff]
  %s599 = scalar_lea.vmem %s6, 2
  %v600 = vld [vmem:[%s599] sm:$0x1]
  %v602 = vlaneseq
  %v603 = vshrl.u32 %v602, 7
  %v604 = vsub.s32 0, %v603
  %v605 = vrot.slane %v600, %v604
  %v608 = vsel %vm127, %v593, 0
  %610 = vmatprep.subr.mxu0 0.0
  %611 = vmatpush1.msra.mxu0 %v595
  %612 = vmatprep.subr.mxu0 0.0
  %613 = vmatpush1.msra.mxu0 %v596
  %614 = vmatprep.subr.mxu0 0.0
  %615 = vmatpush1.msra.mxu0 %v597
  %616 = vmatprep.subr.mxu0 0.0
  %617 = vmatpush1.msra.mxu0 %v598
  %618 = vmatprep.subr.mxu0 0.0
  %619 = vmatpush1.msra.mxu0 0.0
  %620 = vmatprep.subr.mxu0 0.0
  %621 = vmatpush1.msra.mxu0 0.0
  %622 = vmatprep.subr.mxu0 0.0
  %623 = vmatpush1.msra.mxu0 0.0
  %624 = vmatprep.subr.mxu0 0.0
  %625 = vmatpush1.msra.mxu0 0.0
  %626 = vmatprep.subr.mxu0 0.0
  %627 = vmatpush1.msra.mxu0 0.0
  %628 = vmatprep.subr.mxu0 0.0
  %629 = vmatpush1.msra.mxu0 0.0
  %630 = vmatprep.subr.mxu0 0.0
  %631 = vmatpush1.msra.mxu0 0.0
  %632 = vmatprep.subr.mxu0 0.0
  %633 = vmatpush1.msra.mxu0 0.0
  %634 = vmatprep.subr.mxu0 0.0
  %635 = vmatpush1.msra.mxu0 0.0
  %636 = vmatprep.subr.mxu0 0.0
  %637 = vmatpush1.msra.mxu0 0.0
  %638 = vmatprep.subr.mxu0 0.0
  %639 = vmatpush1.msra.mxu0 0.0
  %640 = vmatprep.subr.mxu0 0.0
  %641 = vmatpush1.msra.mxu0 0.0
  %642 = vmatprep.subr.mxu0 0.0
  %643 = vmatpush1.msra.mxu0 0.0
  %644 = vmatprep.subr.mxu0 0.0
  %645 = vmatpush1.msra.mxu0 0.0
  %646 = vmatprep.subr.mxu0 0.0
  %647 = vmatpush1.msra.mxu0 0.0
  %648 = vmatprep.subr.mxu0 0.0
  %649 = vmatpush1.msra.mxu0 0.0
  %650 = vmatprep.subr.mxu0 0.0
  %651 = vmatpush1.msra.mxu0 0.0
  %652 = vmatprep.subr.mxu0 0.0
  %653 = vmatpush1.msra.mxu0 0.0
  %654 = vmatprep.subr.mxu0 0.0
  %655 = vmatpush1.msra.mxu0 0.0
  %656 = vmatprep.subr.mxu0 0.0
  %657 = vmatpush1.msra.mxu0 0.0
  %658 = vmatprep.subr.mxu0 0.0
  %659 = vmatpush1.msra.mxu0 0.0
  %660 = vmatprep.subr.mxu0 0.0
  %661 = vmatpush1.msra.mxu0 0.0
  %662 = vmatprep.subr.mxu0 0.0
  %663 = vmatpush1.msra.mxu0 0.0
  %664 = vmatprep.subr.mxu0 0.0
  %665 = vmatpush1.msra.mxu0 0.0
  %666 = vmatprep.subr.mxu0 0.0
  %667 = vmatpush1.msra.mxu0 0.0
  %668 = vmatprep.subr.mxu0 0.0
  %669 = vmatpush1.msra.mxu0 0.0
  %670 = vmatprep.subr.mxu0 0.0
  %671 = vmatpush1.msra.mxu0 0.0
  %672 = vmatprep.subr.mxu0 0.0
  %673 = vmatpush1.msra.mxu0 0.0
  %674 = vmatprep.mubr.f32.mxu0 0.0
  %675 = vmatmul.mubr.f32.gmra.mrb[0].mxu0 %v608
  %v676 = vpop.f32.mrb[0].mxu0
  %v677 = vadd.f32 %v605, %v676
  %v678 = vpop.f32.mrb[0].mxu0
  %679 = vdwg.mxu0
  %681 = vrot.lane.b32.xlu0 %v482, 8
  %v682 = vpop.permute.xlu0 %681
  %685 = vrot.lane.b32.xlu0 %v677, 16
  %v686 = vpop.permute.xlu0 %685
  %vm688 = vcmask 64512
  %v689 = vsel %vm688, %v287, %v682
  %v690 = vsel %vm29, %v689, %v686
  %vm691 = vcmask 195584
  %692 = vst.msk [vmem:[%s7] sm:$0xff] %vm691, %v690
  // Predicated region
  $region30: #{mlpc_forward.1} parent=0 // pred_check
    _
  $region31: #{mlpc_forward.1} parent=0 // pred_check_branch
    %694 = sbr.rel (0) target = $region33
  $region32: #{mlpc_forward.1} parent=0 // pred_region
    _
  $region33: #{mlpc_forward.1} parent=0 // pred_fallthru
    _
  // Predicated region
  $region34: #{mlpc_forward.1} parent=0 // pred_check
    _
  $region35: #{mlpc_forward.1} parent=0 // pred_check_branch
    %696 = sbr.rel (0) target = $region37
  $region36: #{mlpc_forward.1} parent=0 // pred_region
    _
  $region37: #{mlpc_forward.1} parent=0 // pred_fallthru
    _

</llo_original>
